<compile_context>
chip_gen: v6e
topology: v6e:2x2x1
jax: 0.10.0
libtpu: 0.0.40
codegen_flags: <defaults>
</compile_context>

<pallas_src>
import functools

import jax
import jax.numpy as jnp
from jax import lax
from jax.experimental import pallas as pl
from jax.experimental.pallas import tpu as pltpu

EPS_PPO = 1e-05
_LANE = 128
_SUBLANE = 8
_TILE = _SUBLANE * _LANE

_VMEM_SPEC = pl.BlockSpec(memory_space=pltpu.MemorySpace.VMEM)
_SMEM_SPEC = pl.BlockSpec(memory_space=pltpu.MemorySpace.SMEM)
_PPO_PARAMS = pltpu.CompilerParams(vmem_limit_bytes=32 * 1024 * 1024)


# ---------------------------------------------------------------------------
# layout helpers (wrapper-side; pure layout plumbing, outside the kernels)
# ---------------------------------------------------------------------------
def _stack_lane_dense(arrays):
    """K arrays of (N,1)/(N,) -> zero-padded f32 (K, rows, 128), rows % 8 == 0."""
    flat = jnp.stack([jnp.asarray(a, jnp.float32).reshape(-1) for a in arrays],
                     axis=0)
    k, n = flat.shape
    padded = ((n + _TILE - 1) // _TILE) * _TILE
    if padded != n:
        flat = jnp.pad(flat, ((0, 0), (0, padded - n)))
    return flat.reshape(k, padded // _LANE, _LANE), n, padded


def _valid_mask(shape, n):
    """1.0 where the flattened index < n (true element count), else 0.0."""
    row = lax.broadcasted_iota(jnp.int32, shape, 0)
    col = lax.broadcasted_iota(jnp.int32, shape, 1)
    return ((row * shape[1] + col) < n).astype(jnp.float32)


# ---------------------------------------------------------------------------
# Kernel 1: get_advantages  ->  (returns - value_preds), normalized with
# torch-style unbiased std + EPS_PPO, on a lane-dense (rows,128) block.
# Single-pass mean/variance; no masking needed: the inputs are zero-padded so
# the padded advantages are exactly 0, and the wrapper slices the output [:n].
# ---------------------------------------------------------------------------
def _make_adv_norm_kernel(n):
    inv_n = 1.0 / n
    inv_nm1 = 1.0 / max(n - 1, 1)

    def kernel(stk_ref, out_ref):
        adv = stk_ref[0] - stk_ref[1]           # zero in pad region
        s = jnp.sum(adv)
        sq = jnp.sum(adv * adv)
        mean = s * inv_n
        var = (sq - s * mean) * inv_nm1          # torch unbiased std
        inv_std = 1.0 / (jnp.sqrt(var) + EPS_PPO)
        out_ref[...] = (adv - mean) * inv_std    # pad tail sliced off by wrapper

    return kernel


@functools.partial(jax.jit, static_argnames=("use_normalized_advantage",))
def get_advantages(returns, value_preds, use_normalized_advantage=True):
    returns = jnp.asarray(returns, jnp.float32)
    value_preds = jnp.asarray(value_preds, jnp.float32)
    if not use_normalized_advantage:
        return returns - value_preds
    stk, n, _ = _stack_lane_dense((returns, value_preds))
    out = pl.pallas_call(
        _make_adv_norm_kernel(n),
        out_shape=jax.ShapeDtypeStruct(stk.shape[1:], jnp.float32),
        in_specs=[_VMEM_SPEC],
        out_specs=_VMEM_SPEC,
        compiler_params=_PPO_PARAMS,
    )(stk)
    return out.reshape(-1)[:n].reshape(returns.shape)


# ---------------------------------------------------------------------------
# Kernel 2: PPO losses (optionally fused with advantage normalization):
#   ratio / clipped surrogate -> action_loss
#   clipped value loss        -> value_loss
#   total = value_loss*c_v + action_loss - dist_entropy*c_e
# One stacked (K, rows, 128) input; rows (static indices):
#   0=values, 1=action_log_probs, 2=old_action_log_probs, 3=value_preds,
#   4=returns, [5=adv_targ when not fused].
# Losses are packed into one (8,128) vreg tile via sublane-iota selects:
#   row 0 = value_loss, row 1 = action_loss, row 2 = total_loss.
# ---------------------------------------------------------------------------
def _make_ppo_loss_kernel(n, total_elems, clip_param, value_loss_coef,
                          entropy_coef, use_clipped_value_loss, fuse_adv_norm):
    inv_n = 1.0 / n
    inv_nm1 = 1.0 / max(n - 1, 1)
    lo = 1.0 - clip_param
    hi = 1.0 + clip_param
    needs_mask = (n != total_elems)              # skip mask when lane-exact

    def kernel(stk_ref, dist_ent_ref, out_ref):
        values = stk_ref[0]
        logp = stk_ref[1]
        old_logp = stk_ref[2]
        vpred = stk_ref[3]
        ret = stk_ref[4]

        if fuse_adv_norm:
            # advantage normalization fused in (saves a launch + HBM roundtrip)
            adv_raw = ret - vpred                # zero in pad region
            s = jnp.sum(adv_raw)
            sq = jnp.sum(adv_raw * adv_raw)
            mean = s * inv_n
            var = (sq - s * mean) * inv_nm1      # single-pass unbiased var
            inv_std = 1.0 / (jnp.sqrt(var) + EPS_PPO)
            centered = adv_raw - mean
            if needs_mask:
                # only the centering needs a mask (pad would become -mean)
                centered = centered * _valid_mask(values.shape, n)
            adv = centered * inv_std
        else:
            adv = stk_ref[5]                     # zero-padded: no mask needed

        # policy (surrogate) loss — pad lanes contribute exactly 0 (adv == 0)
        ratio = jnp.exp(logp - old_logp)
        surr1 = ratio * adv
        surr2 = jnp.clip(ratio, lo, hi) * adv
        action_loss = -jnp.sum(jnp.minimum(surr1, surr2)) * inv_n

        # value loss — pad lanes are 0 (values/vpred/ret all zero-padded)
        if use_clipped_value_loss:
            v_clipped = vpred + jnp.clip(values - vpred, -clip_param, clip_param)
            vl = (values - ret) * (values - ret)
            vlc = (v_clipped - ret) * (v_clipped - ret)
            value_loss = 0.5 * jnp.sum(jnp.maximum(vl, vlc)) * inv_n
        else:
            diff = ret - values
            value_loss = 0.5 * jnp.sum(diff * diff) * inv_n

        dist_entropy = dist_ent_ref[0]           # SMEM scalar
        total = (value_loss * value_loss_coef + action_loss
                 - dist_entropy * entropy_coef)

        # single full-tile, full-lane store; wrapper reads out[:3, 0]
        sub = lax.broadcasted_iota(jnp.int32, out_ref.shape, 0)
        out_ref[...] = jnp.where(
            sub == 0, value_loss,
            jnp.where(sub == 1, action_loss,
                      jnp.where(sub == 2, total, 0.0)))

    return kernel


def _run_ppo_loss(stacked, n, total_elems, dist_entropy, clip_param,
                  value_loss_coef, entropy_coef, use_clipped_value_loss,
                  fuse_adv_norm):
    dist_ent = jnp.asarray(dist_entropy, jnp.float32).reshape(1)
    kernel = _make_ppo_loss_kernel(
        n, total_elems, float(clip_param), float(value_loss_coef),
        float(entropy_coef), bool(use_clipped_value_loss), fuse_adv_norm)
    out = pl.pallas_call(
        kernel,
        out_shape=jax.ShapeDtypeStruct((_SUBLANE, _LANE), jnp.float32),
        in_specs=[_VMEM_SPEC, _SMEM_SPEC],
        out_specs=_VMEM_SPEC,
        compiler_params=_PPO_PARAMS,
    )(stacked, dist_ent)
    return out[:3, 0]    # [value_loss, action_loss, total_loss]


@functools.partial(jax.jit, static_argnames=(
    "clip_param", "value_loss_coef", "entropy_coef", "use_clipped_value_loss"))
def ppo_losses(values, action_log_probs, old_action_log_probs, value_preds,
               returns, adv_targ, dist_entropy, *, clip_param=0.2,
               value_loss_coef=0.5, entropy_coef=0.01,
               use_clipped_value_loss=True):
    """Minibatch path: adv_targ supplied (sampled from the rollout).

    Returns a (3,) array: [value_loss, action_loss, total_loss]."""
    stacked, n, padded = _stack_lane_dense(
        (values, action_log_probs, old_action_log_probs, value_preds,
         returns, adv_targ))
    return _run_ppo_loss(stacked, n, padded, dist_entropy, clip_param,
                         value_loss_coef, entropy_coef,
                         use_clipped_value_loss, fuse_adv_norm=False)


@functools.partial(jax.jit, static_argnames=(
    "clip_param", "value_loss_coef", "entropy_coef", "use_clipped_value_loss"))
def ppo_update_losses_fused(values, action_log_probs, old_action_log_probs,
                            value_preds, returns, dist_entropy, *,
                            clip_param=0.2, value_loss_coef=0.5,
                            entropy_coef=0.01, use_clipped_value_loss=True):
    """Fused hot path: advantage normalization + losses in one pallas_call.

    Returns a (3,) array: [value_loss, action_loss, total_loss]."""
    stacked, n, padded = _stack_lane_dense(
        (values, action_log_probs, old_action_log_probs, value_preds, returns))
    return _run_ppo_loss(stacked, n, padded, dist_entropy, clip_param,
                         value_loss_coef, entropy_coef,
                         use_clipped_value_loss, fuse_adv_norm=True)


# ---------------------------------------------------------------------------
# Kernel 3: x_y_to_sin_cos — one lane-dense (3, rows, 128) slab with the
# component index on the leading axis and B on the lane axis.  Whole-vreg
# elementwise math, exact division (matches torch precision), unmasked stores.
# Output row order matches torch.cat([x/dist, y/dist, z/dist_z], dim=1).
# ---------------------------------------------------------------------------
def _xyz_kernel(xyz_ref, out_ref):
    eps = 1e-05
    x = xyz_ref[0]
    y = xyz_ref[1]
    z = xyz_ref[2]
    r2 = x * x + y * y
    dist = jnp.sqrt(r2) + eps
    dist_z = jnp.sqrt(r2 + z * z) + eps
    out_ref[0] = x / dist
    out_ref[1] = y / dist
    out_ref[2] = z / dist_z


@jax.jit
def x_y_to_sin_cos(x, y, z):
    xyz, b, _ = _stack_lane_dense((x, y, z))     # (3, rows, 128)
    out = pl.pallas_call(
        _xyz_kernel,
        out_shape=jax.ShapeDtypeStruct(xyz.shape, jnp.float32),
        in_specs=[_VMEM_SPEC],
        out_specs=_VMEM_SPEC,
    )(xyz)
    # (B, 3): columns = sin, cos, sin_z — same order as torch.cat(..., dim=1)
    return out.reshape(3, -1)[:, :b].T


# TODO(synk): actor_critic.evaluate_actions / audio_encoder / visual_encoder /
# classifier, the classifier cross-entropy / regressor MSE on those external
# outputs, and the Adam optimizer / grad clipping / replay-buffer bookkeeping
# are external modules / training state, not SA2PPO's own forward math; their
# outputs are kernel inputs here.


if __name__ == "__main__":
    key = jax.random.PRNGKey(0)
    N = 64   # T * num_envs rollout samples
    B = 16   # batch for x_y_to_sin_cos

    ks = jax.random.split(key, 9)
    returns = jax.random.normal(ks[0], (N, 1), jnp.float32)
    value_preds = jax.random.normal(ks[1], (N, 1), jnp.float32)
    values = jax.random.normal(ks[2], (N, 1), jnp.float32)
    action_log_probs = -jnp.abs(jax.random.normal(ks[3], (N, 1), jnp.float32))
    old_action_log_probs = -jnp.abs(jax.random.normal(ks[4], (N, 1), jnp.float32))
    dist_entropy = jnp.abs(jax.random.normal(ks[5], (), jnp.float32))
    xb = jax.random.normal(ks[6], (B, 1), jnp.float32)
    yb = jax.random.normal(ks[7], (B, 1), jnp.float32)
    zb = jax.random.normal(ks[8], (B, 1), jnp.float32)

    # 1) standalone advantage normalization (module.get_advantages)
    adv = get_advantages(returns, value_preds)

    # 2) PPO minibatch losses given adv_targ (general minibatch path)
    losses = ppo_losses(
        values, action_log_probs, old_action_log_probs, value_preds,
        returns, adv, dist_entropy,
        clip_param=0.2, value_loss_coef=0.5, entropy_coef=0.01)
    value_loss, action_loss, total_loss = losses[0], losses[1], losses[2]

    # 2b) fused adv-norm + losses in a single pallas_call (update hot path)
    losses_f = ppo_update_losses_fused(
        values, action_log_probs, old_action_log_probs, value_preds,
        returns, dist_entropy,
        clip_param=0.2, value_loss_coef=0.5, entropy_coef=0.01)

    # 3) rotation label helper
    rot_label = x_y_to_sin_cos(xb, yb, zb)

    jax.block_until_ready((adv, value_loss, action_loss, total_loss,
                           losses_f, rot_label))
    print("KERNEL_OK")
</pallas_src>

<mosaic_0001>
module attributes {stable_mosaic.version = 11 : i64} {
  func.func @kernel(%arg0: memref<2x8x128xf32, #tpu.memory_space<vmem>>, %arg1: memref<8x128xf32, #tpu.memory_space<vmem>>) attributes {dimension_semantics = [], scalar_prefetch = 0 : i64, scratch_operands = 0 : i64, tpu.core_type = #tpu.core_type<tc>} {
    %c0 = arith.constant 0 : index
    %c0_0 = arith.constant 0 : index
    %c0_1 = arith.constant 0 : index
    %0 = vector.load %arg0[%c0, %c0_0, %c0_1] : memref<2x8x128xf32, #tpu.memory_space<vmem>>, vector<1x8x128xf32>
    %1 = vector.shape_cast %0 : vector<1x8x128xf32> to vector<8x128xf32>
    %c1 = arith.constant 1 : index
    %c0_2 = arith.constant 0 : index
    %c0_3 = arith.constant 0 : index
    %2 = vector.load %arg0[%c1, %c0_2, %c0_3] : memref<2x8x128xf32, #tpu.memory_space<vmem>>, vector<1x8x128xf32>
    %3 = vector.shape_cast %2 : vector<1x8x128xf32> to vector<8x128xf32>
    %4 = arith.subf %1, %3 : vector<8x128xf32>
    %5 = vector.shape_cast %4 : vector<8x128xf32> to vector<1x8x128xf32>
    %cst = arith.constant dense<0.000000e+00> : vector<1xf32>
    %6 = vector.multi_reduction <add>, %5, %cst [1, 2] : vector<1x8x128xf32> to vector<1xf32>
    %7 = vector.shape_cast %6 : vector<1xf32> to vector<1x1x1xf32>
    %8 = vector.extract %7[0, 0, 0] : f32 from vector<1x1x1xf32>
    %9 = arith.mulf %4, %4 : vector<8x128xf32>
    %10 = vector.shape_cast %9 : vector<8x128xf32> to vector<1x8x128xf32>
    %cst_4 = arith.constant dense<0.000000e+00> : vector<1xf32>
    %11 = vector.multi_reduction <add>, %10, %cst_4 [1, 2] : vector<1x8x128xf32> to vector<1xf32>
    %12 = vector.shape_cast %11 : vector<1xf32> to vector<1x1x1xf32>
    %13 = vector.extract %12[0, 0, 0] : f32 from vector<1x1x1xf32>
    %cst_5 = arith.constant 1.562500e-02 : f32
    %14 = arith.mulf %8, %cst_5 : f32
    %15 = arith.mulf %8, %14 : f32
    %16 = arith.subf %13, %15 : f32
    %cst_6 = arith.constant 0.0158730168 : f32
    %17 = arith.mulf %16, %cst_6 : f32
    %18 = math.sqrt %17 : f32
    %cst_7 = arith.constant 9.99999974E-6 : f32
    %19 = arith.addf %18, %cst_7 : f32
    %cst_8 = arith.constant 1.000000e+00 : f32
    %20 = arith.divf %cst_8, %19 : f32
    %21 = vector.broadcast %14 : f32 to vector<8x128xf32>
    %22 = arith.subf %4, %21 : vector<8x128xf32>
    %23 = vector.broadcast %20 : f32 to vector<8x128xf32>
    %24 = arith.mulf %22, %23 : vector<8x128xf32>
    %c0_9 = arith.constant 0 : index
    %c0_10 = arith.constant 0 : index
    %25 = vector.load %arg1[%c0_9, %c0_10] : memref<8x128xf32, #tpu.memory_space<vmem>>, vector<8x128xf32>
    tpu.vector_store %arg1[%c0_9, %c0_10], %24 {strides = array<i32>} : memref<8x128xf32, #tpu.memory_space<vmem>>, vector<8x128xf32>,
    return
  }
}

</mosaic_0001>

<llo_original>
// kernel: get_advantages.1
$region0: #{get_advantages.1}
  #allocation0 [shape = 'u32[]', space=smem, size = 0x4, offset = 0x4, fixed_abs, tag = 'smem constant byte address 0x4 - core index']
  #allocation1 [shape = 'u32[144,128]{1,0:T(1,128)}', space=vmem, size = 0x12000, scoped, tag = 'internal scratch']
  %s0 = inlined_call_operand.vmem [shape: f32[2,8,128], index: 0, kind: input, shape index: {}]
  %s1 = inlined_call_operand.vmem [shape: f32[8,128], index: 1, kind: output, shape index: {}]
  %s2 = sld [smem:[#allocation0]]
  $region14: #{get_advantages.1} parent=0
    _
  %s4 = ssub.s32 1, %s2
  %s5 = scalar_select 0, %s4, %s2
  // Predicated region
  $region2: #{get_advantages.1} parent=0 // pred_check
    _
  $region3: #{get_advantages.1} parent=0 // pred_check_branch
    %7 = sbr.rel (0) target = $region5
  $region4: #{get_advantages.1} parent=0 // pred_region
    _
  $region5: #{get_advantages.1} parent=0 // pred_fallthru
    _
  %v8 = vld [vmem:[%s0] sm:$0xff]
  %s9 = scalar_lea.vmem %s0, 8
  %v10 = vld [vmem:[%s9] sm:$0xff]
  %v11 = vsub.f32 %v8, %v10
  %12 = vadd.xlane.f32.xlu0 %v11
  %v13 = vpop.xlane.xlu0 %12
  %v14 = vrot.slane %v13, 4
  %v15 = vadd.f32 %v13, %v14
  %v16 = vrot.slane %v15, 2
  %v17 = vadd.f32 %v15, %v16
  %v18 = vrot.slane %v17, 1
  %v19 = vadd.f32 %v17, %v18
  %s20 = vtos %v19
  %v21 = vmul.f32 %v11, %v11
  %22 = vadd.xlane.f32.xlu0 %v21
  %v23 = vpop.xlane.xlu0 %22
  %v24 = vrot.slane %v23, 4
  %v25 = vadd.f32 %v23, %v24
  %v26 = vrot.slane %v25, 2
  %v27 = vadd.f32 %v25, %v26
  %v28 = vrot.slane %v27, 1
  %v29 = vadd.f32 %v27, %v28
  %s30 = vtos %v29
  %s31 = smul.f32 %s20, 0.015625
  %s32 = smul.f32 %s20, %s31
  %s33 = ssub.f32 %s30, %s32
  %s34 = smul.f32 %s33, 0.015873017
  %v35 = vstv %s34
  %v36 = vrsqrt.pop %v35
  %v37 = vmul.f32 %v35, %v36
  %vm38 = vcmp.eq.f32.partialorder %v35, inf
  %v39 = vsel %vm38, %v35, %v37
  %vm40 = vcmp.eq.f32.partialorder %v35, 0.0
  %v41 = vand.u32 %v35, 2147483648
  %v42 = vsel %vm40, %v41, %v39
  %s43 = vtos %v42
  %s44 = sadd.f32 %s43, 1e-05
  %v45 = vstv %s44
  %v46 = vrcp.pop %v45
  %s47 = vtos %v46
  %v48 = vstv %s31
  %v49 = vsub.f32 %v11, %v48
  %v50 = vstv %s47
  %v51 = vmul.f32 %v49, %v50
  %52 = vst [vmem:[%s1] sm:$0xff] %v51
  // Predicated region
  $region6: #{get_advantages.1} parent=0 // pred_check
    _
  $region7: #{get_advantages.1} parent=0 // pred_check_branch
    %54 = sbr.rel (0) target = $region9
  $region8: #{get_advantages.1} parent=0 // pred_region
    _
  $region9: #{get_advantages.1} parent=0 // pred_fallthru
    _
  // Predicated region
  $region10: #{get_advantages.1} parent=0 // pred_check
    _
  $region11: #{get_advantages.1} parent=0 // pred_check_branch
    %56 = sbr.rel (0) target = $region13
  $region12: #{get_advantages.1} parent=0 // pred_region
    _
  $region13: #{get_advantages.1} parent=0 // pred_fallthru
    _

</llo_original>
